<compile_context>
chip_gen: v5e
topology: v5e:2x2
jax: 0.10.0
libtpu: 0.0.40
codegen_flags: <defaults>
</compile_context>

<pallas_src>
import jax
import jax.numpy as jnp
from jax import lax
from jax.experimental import pallas as pl
from jax.experimental.pallas import tpu as pltpu

INPUT_DIM = 4
HIDDEN_DIM = 32
Y_DIM = 1
OUT_PAD = 128          # lane-dense padded output width (real result lives in column 0)
STEPS_PER_FLUSH = 8    # static unroll width inside the recurrence fori_loop
MAX_CHUNK = 2048       # timesteps per grid block


def _round_up(n, m):
    return (n + m - 1) // m * m


def mlp_lstm_kernel(x_ref, wih_t_ref, whh_t_ref, b_ref,
                    w1_t_ref, b1_ref, w2p_ref, b2p_ref,
                    out_ref,
                    gx_ref, h_all_ref, h_ref, c_ref):
    H = HIDDEN_DIM
    TL = x_ref.shape[0]

    # h/c scratch persists across grid iterations (sequence chunks); zero only on
    # the first chunk (PyTorch default h0 = c0 = 0).
    @pl.when(pl.program_id(0) == 0)
    def _():
        h_ref[...] = jnp.zeros_like(h_ref)
        c_ref[...] = jnp.zeros_like(c_ref)

    # Input contribution to all gates for the whole chunk: one bulk MXU matmul.
    gx_ref[...] = (
        jnp.dot(x_ref[...].astype(jnp.bfloat16), wih_t_ref[...],
                preferred_element_type=jnp.float32)
        + b_ref[...]
    )

    # Recurrent weight, hoisted out of the recurrence.  Kept in f32: avoids the
    # per-step h->bf16 cast on the serial chain and compounding quantization error.
    whh_t = whh_t_ref[...]      # (H, 4H) f32

    # TODO(synk): holding W_hh in the MXU weight registers across the recurrence
    # (pltpu.matmul_push_rhs / matmul_acc_lhs / matmul_pop) would remove the per-step
    # RHS push latency; kept as a plain jnp.dot here for lowering robustness across
    # TPU generations.

    def outer(tb, carry):
        h, c = carry                                             # (1, H) f32 in vregs
        base = pl.multiple_of(tb * STEPS_PER_FLUSH, STEPS_PER_FLUSH)
        for k in range(STEPS_PER_FLUSH):                         # static 8-wide unroll
            # Single-sublane VMEM load of the precomputed gate row: independent of h,
            # lands at sublane 0, and gets hoisted by the scheduler (vld slots idle).
            gx_row = gx_ref[pl.ds(base + k, 1), :]               # (1, 4H) f32
            g = gx_row + jnp.dot(h, whh_t, preferred_element_type=jnp.float32)
            # sigmoid and tanh over the FULL (1,4H) vreg -> two independent EUP pushes
            # back-to-back; slice the gate quarters afterwards.
            s = jax.nn.sigmoid(g)
            tg = jnp.tanh(g)
            i_g = s[:, 0:H]
            f_g = s[:, H:2 * H]
            o_g = s[:, 3 * H:4 * H]
            g_g = tg[:, 2 * H:3 * H]
            c = f_g * c + i_g * g_g                              # elementwise stays f32
            h = o_g * jnp.tanh(c)
            # Per-row store: off the critical path, <=1 vst per ~100-cycle step.
            h_all_ref[pl.ds(base + k, 1), :] = h
        return (h, c)

    h_fin, c_fin = lax.fori_loop(0, TL // STEPS_PER_FLUSH, outer,
                                 (h_ref[...], c_ref[...]))
    h_ref[...] = h_fin
    c_ref[...] = c_fin

    # Head (bulk, per chunk): Linear(H,H) -> ReLU -> Linear(H, OUT_PAD), lane-dense store.
    h1 = (jnp.dot(h_all_ref[...].astype(jnp.bfloat16), w1_t_ref[...],
                  preferred_element_type=jnp.float32)
          + b1_ref[...])
    h1 = jnp.maximum(h1, 0.0)
    out_ref[...] = (
        jnp.dot(h1.astype(jnp.bfloat16), w2p_ref[...],
                preferred_element_type=jnp.float32)
        + b2p_ref[...]
    )


def mlp_forward(x, t, params):
    """x: any shape whose flattening gives (-1, INPUT_DIM).  t is unused (matches the
    PyTorch forward, which ignores `t`)."""
    del t
    x2 = x.reshape(-1, INPUT_DIM).astype(jnp.float32)
    L = x2.shape[0]
    H = HIDDEN_DIM

    # Chunk the (single, flattened) sequence; pad L up to a multiple of the chunk.
    TL = min(MAX_CHUNK, _round_up(max(L, STEPS_PER_FLUSH), STEPS_PER_FLUSH))
    L_pad = _round_up(L, TL)
    if L_pad != L:
        x2 = jnp.pad(x2, ((0, L_pad - L), (0, 0)))

    w_ih, w_hh, b_ih, b_hh, w1, b1, w2, b2 = params
    # Pre-transpose weights; combine the two LSTM biases (f32).
    wih_t = w_ih.T.astype(jnp.bfloat16)                       # (D, 4H) bf16 (bulk matmul)
    whh_t = w_hh.T.astype(jnp.float32)                        # (H, 4H) f32 (recurrence)
    b = (b_ih + b_hh).reshape(1, 4 * H).astype(jnp.float32)   # (1, 4H)
    w1_t = w1.T.astype(jnp.bfloat16)                          # (H, H)
    b1r = b1.reshape(1, H).astype(jnp.float32)                # (1, H)
    # Pad the tiny output projection to 128 lanes (column 0 is the real output).
    w2p = jnp.zeros((H, OUT_PAD), jnp.float32).at[:, :Y_DIM].set(w2.T).astype(jnp.bfloat16)
    b2p = jnp.zeros((1, OUT_PAD), jnp.float32).at[:, :Y_DIM].set(b2.reshape(1, Y_DIM))

    grid = (L_pad // TL,)

    # VMEM budget: double-buffered x/out blocks + gx/h_all scratch + weights, 2x headroom.
    vmem_need = (2 * TL * INPUT_DIM * 4
                 + 2 * TL * OUT_PAD * 4
                 + TL * 4 * H * 4
                 + TL * H * 4
                 + 512 * 1024)
    vmem_limit = int(max(4 * 1024 * 1024, 2 * vmem_need))

    out_full = pl.pallas_call(
        mlp_lstm_kernel,
        out_shape=jax.ShapeDtypeStruct((L_pad, OUT_PAD), jnp.float32),
        grid_spec=pltpu.PrefetchScalarGridSpec(
            num_scalar_prefetch=0,
            grid=grid,
            in_specs=[
                pl.BlockSpec((TL, INPUT_DIM), lambda i: (i, 0)),   # x chunk
                pl.BlockSpec((INPUT_DIM, 4 * H), lambda i: (0, 0)),
                pl.BlockSpec((H, 4 * H), lambda i: (0, 0)),
                pl.BlockSpec((1, 4 * H), lambda i: (0, 0)),
                pl.BlockSpec((H, H), lambda i: (0, 0)),
                pl.BlockSpec((1, H), lambda i: (0, 0)),
                pl.BlockSpec((H, OUT_PAD), lambda i: (0, 0)),
                pl.BlockSpec((1, OUT_PAD), lambda i: (0, 0)),
            ],
            out_specs=pl.BlockSpec((TL, OUT_PAD), lambda i: (i, 0)),
            scratch_shapes=[
                pltpu.VMEM((TL, 4 * H), jnp.float32),   # gx: input gate pre-activations
                pltpu.VMEM((TL, H), jnp.float32),       # h_all: hidden states of chunk
                pltpu.VMEM((1, H), jnp.float32),        # h state (persists across chunks)
                pltpu.VMEM((1, H), jnp.float32),        # c state (persists across chunks)
            ],
        ),
        compiler_params=pltpu.CompilerParams(
            dimension_semantics=("arbitrary",),          # serial recurrence across chunks
            vmem_limit_bytes=vmem_limit,
        ),
    )(x2, wih_t, whh_t, b, w1_t, b1r, w2p, b2p)

    return out_full[:L, :Y_DIM]


def init_params(key):
    """Deterministic synthetic init matching PyTorch parameter shapes."""
    H, D = HIDDEN_DIM, INPUT_DIM
    ks = jax.random.split(key, 8)
    s = 1.0 / jnp.sqrt(H)
    w_ih = jax.random.uniform(ks[0], (4 * H, D), jnp.float32, -s, s)
    w_hh = jax.random.uniform(ks[1], (4 * H, H), jnp.float32, -s, s)
    b_ih = jax.random.uniform(ks[2], (4 * H,), jnp.float32, -s, s)
    b_hh = jax.random.uniform(ks[3], (4 * H,), jnp.float32, -s, s)
    w1 = jax.random.uniform(ks[4], (H, H), jnp.float32, -s, s)
    b1 = jax.random.uniform(ks[5], (H,), jnp.float32, -s, s)
    w2 = jax.random.uniform(ks[6], (Y_DIM, H), jnp.float32, -s, s)
    b2 = jax.random.uniform(ks[7], (Y_DIM,), jnp.float32, -s, s)
    return (w_ih, w_hh, b_ih, b_hh, w1, b1, w2, b2)


if __name__ == "__main__":
    key = jax.random.PRNGKey(0)
    k_x, k_p = jax.random.split(key)

    params = init_params(k_p)

    # Small input: (batch=2, seq=8, input_dim=4) -> view(-1, 4) -> sequence length 16
    x = jax.random.normal(k_x, (2, 8, INPUT_DIM), jnp.float32)
    t = jnp.zeros((2,), jnp.float32)   # unused by the forward, kept for signature parity

    out = mlp_forward(x, t, params)
    out = jax.block_until_ready(out)

    assert out.shape == (16, 1), out.shape
    assert jnp.all(jnp.isfinite(out))
    print("KERNEL_OK")
</pallas_src>

<mosaic_0001>
module attributes {stable_mosaic.version = 11 : i64} {
  func.func @mlp_lstm_kernel(%arg0: i32, %arg1: memref<16x4xf32, #tpu.memory_space<vmem>>, %arg2: memref<4x128xbf16, #tpu.memory_space<vmem>>, %arg3: memref<32x128xf32, #tpu.memory_space<vmem>>, %arg4: memref<1x128xf32, #tpu.memory_space<vmem>>, %arg5: memref<32x32xbf16, #tpu.memory_space<vmem>>, %arg6: memref<1x32xf32, #tpu.memory_space<vmem>>, %arg7: memref<32x128xbf16, #tpu.memory_space<vmem>>, %arg8: memref<1x128xf32, #tpu.memory_space<vmem>>, %arg9: memref<16x128xf32, #tpu.memory_space<vmem>>, %arg10: memref<16x128xf32, #tpu.memory_space<vmem>>, %arg11: memref<16x32xf32, #tpu.memory_space<vmem>>, %arg12: memref<1x32xf32, #tpu.memory_space<vmem>>, %arg13: memref<1x32xf32, #tpu.memory_space<vmem>>) attributes {dimension_semantics = [#tpu.dimension_semantics<arbitrary>], iteration_bounds = array<i64: 1>, scalar_prefetch = 0 : i64, scratch_operands = 4 : i64, tpu.core_type = #tpu.core_type<tc>, window_params = [{transform_indices = @transform_0, window_bounds = array<i64: 16, 4>}, {pipeline_mode = #tpu.pipeline_mode<synchronous>, transform_indices = @transform_1, window_bounds = array<i64: 4, 128>}, {pipeline_mode = #tpu.pipeline_mode<synchronous>, transform_indices = @transform_2, window_bounds = array<i64: 32, 128>}, {pipeline_mode = #tpu.pipeline_mode<synchronous>, transform_indices = @transform_3, window_bounds = array<i64: 1, 128>}, {pipeline_mode = #tpu.pipeline_mode<synchronous>, transform_indices = @transform_4, window_bounds = array<i64: 32, 32>}, {pipeline_mode = #tpu.pipeline_mode<synchronous>, transform_indices = @transform_5, window_bounds = array<i64: 1, 32>}, {pipeline_mode = #tpu.pipeline_mode<synchronous>, transform_indices = @transform_6, window_bounds = array<i64: 32, 128>}, {pipeline_mode = #tpu.pipeline_mode<synchronous>, transform_indices = @transform_7, window_bounds = array<i64: 1, 128>}, {transform_indices = @transform_8, window_bounds = array<i64: 16, 128>}]} {
    %c0_i32 = arith.constant 0 : i32
    %0 = arith.cmpi eq, %arg0, %c0_i32 : i32
    %1 = arith.extui %0 : i1 to i32
    %c0_i32_0 = arith.constant 0 : i32
    %2 = arith.cmpi ne, %1, %c0_i32_0 : i32
    scf.if %2 {
      %cst_35 = arith.constant 0.000000e+00 : f32
      %34 = vector.broadcast %cst_35 : f32 to vector<1x32xf32>
      %c0_36 = arith.constant 0 : index
      %c0_37 = arith.constant 0 : index
      %35 = vector.load %arg12[%c0_36, %c0_37] : memref<1x32xf32, #tpu.memory_space<vmem>>, vector<1x32xf32>
      tpu.vector_store %arg12[%c0_36, %c0_37], %34 {strides = array<i32>} : memref<1x32xf32, #tpu.memory_space<vmem>>, vector<1x32xf32>,
      %cst_38 = arith.constant 0.000000e+00 : f32
      %36 = vector.broadcast %cst_38 : f32 to vector<1x32xf32>
      %c0_39 = arith.constant 0 : index
      %c0_40 = arith.constant 0 : index
      %37 = vector.load %arg13[%c0_39, %c0_40] : memref<1x32xf32, #tpu.memory_space<vmem>>, vector<1x32xf32>
      tpu.vector_store %arg13[%c0_39, %c0_40], %36 {strides = array<i32>} : memref<1x32xf32, #tpu.memory_space<vmem>>, vector<1x32xf32>,
    } else {
    }
    %c0 = arith.constant 0 : index
    %c0_1 = arith.constant 0 : index
    %3 = vector.load %arg1[%c0, %c0_1] : memref<16x4xf32, #tpu.memory_space<vmem>>, vector<16x4xf32>
    %4 = arith.truncf %3 : vector<16x4xf32> to vector<16x4xbf16>
    %c0_2 = arith.constant 0 : index
    %c0_3 = arith.constant 0 : index
    %5 = vector.load %arg2[%c0_2, %c0_3] : memref<4x128xbf16, #tpu.memory_space<vmem>>, vector<4x128xbf16>
    %cst = arith.constant dense<0.000000e+00> : vector<16x128xf32>
    %6 = tpu.matmul %4, %5, %cst {dimension_numbers = #tpu.dot_dimension_numbers<[1], [0], [0], [1], [0, 0, 1, 1], [], []>} : vector<16x4xbf16>, vector<4x128xbf16>, vector<16x128xf32> -> vector<16x128xf32>
    %c0_4 = arith.constant 0 : index
    %c0_5 = arith.constant 0 : index
    %7 = vector.load %arg4[%c0_4, %c0_5] : memref<1x128xf32, #tpu.memory_space<vmem>>, vector<1x128xf32>
    %8 = vector.broadcast %7 : vector<1x128xf32> to vector<16x128xf32>
    %9 = arith.addf %6, %8 : vector<16x128xf32>
    %c0_6 = arith.constant 0 : index
    %c0_7 = arith.constant 0 : index
    %10 = vector.load %arg10[%c0_6, %c0_7] : memref<16x128xf32, #tpu.memory_space<vmem>>, vector<16x128xf32>
    tpu.vector_store %arg10[%c0_6, %c0_7], %9 {strides = array<i32>} : memref<16x128xf32, #tpu.memory_space<vmem>>, vector<16x128xf32>,
    %c0_8 = arith.constant 0 : index
    %c0_9 = arith.constant 0 : index
    %11 = vector.load %arg3[%c0_8, %c0_9] : memref<32x128xf32, #tpu.memory_space<vmem>>, vector<32x128xf32>
    %c0_10 = arith.constant 0 : index
    %c0_11 = arith.constant 0 : index
    %12 = vector.load %arg12[%c0_10, %c0_11] : memref<1x32xf32, #tpu.memory_space<vmem>>, vector<1x32xf32>
    %c0_12 = arith.constant 0 : index
    %c0_13 = arith.constant 0 : index
    %13 = vector.load %arg13[%c0_12, %c0_13] : memref<1x32xf32, #tpu.memory_space<vmem>>, vector<1x32xf32>
    %c0_i32_14 = arith.constant 0 : i32
    %c2_i32 = arith.constant 2 : i32
    %14 = arith.addi %c0_i32_14, %c2_i32 : i32
    %c1_i32 = arith.constant 1 : i32
    %15:2 = scf.for %arg14 = %c0_i32_14 to %14 step %c1_i32 iter_args(%arg15 = %12, %arg16 = %13) -> (vector<1x32xf32>, vector<1x32xf32>)  : i32 {
      %c8_i32 = arith.constant 8 : i32
      %34 = arith.muli %arg14, %c8_i32 : i32
      %35 = tpu.assume_multiple %34, 8 : i32
      %c0_i32_35 = arith.constant 0 : i32
      %36 = arith.addi %35, %c0_i32_35 : i32
      %37 = arith.index_cast %36 : i32 to index
      %c0_36 = arith.constant 0 : index
      %38 = vector.load %arg10[%37, %c0_36] : memref<16x128xf32, #tpu.memory_space<vmem>>, vector<1x128xf32>
      %cst_37 = arith.constant dense<0.000000e+00> : vector<1x128xf32>
      %39 = tpu.matmul %arg15, %11, %cst_37 {dimension_numbers = #tpu.dot_dimension_numbers<[1], [0], [0], [1], [0, 0, 1, 1], [], []>} : vector<1x32xf32>, vector<32x128xf32>, vector<1x128xf32> -> vector<1x128xf32>
      %40 = arith.addf %38, %39 : vector<1x128xf32>
      %41 = arith.negf %40 : vector<1x128xf32>
      %42 = math.exp %41 : vector<1x128xf32>
      %cst_38 = arith.constant 1.000000e+00 : f32
      %43 = vector.broadcast %cst_38 : f32 to vector<1x128xf32>
      %44 = arith.addf %43, %42 : vector<1x128xf32>
      %45 = arith.divf %43, %44 : vector<1x128xf32>
      %46 = math.tanh %40 : vector<1x128xf32>
      %47 = vector.extract_strided_slice %45 {offsets = [0, 0], sizes = [1, 32], strides = [1, 1]} : vector<1x128xf32> to vector<1x32xf32>
      %48 = vector.extract_strided_slice %45 {offsets = [0, 32], sizes = [1, 32], strides = [1, 1]} : vector<1x128xf32> to vector<1x32xf32>
      %49 = vector.extract_strided_slice %45 {offsets = [0, 96], sizes = [1, 32], strides = [1, 1]} : vector<1x128xf32> to vector<1x32xf32>
      %50 = vector.extract_strided_slice %46 {offsets = [0, 64], sizes = [1, 32], strides = [1, 1]} : vector<1x128xf32> to vector<1x32xf32>
      %51 = arith.mulf %48, %arg16 : vector<1x32xf32>
      %52 = arith.mulf %47, %50 : vector<1x32xf32>
      %53 = arith.addf %51, %52 : vector<1x32xf32>
      %54 = math.tanh %53 : vector<1x32xf32>
      %55 = arith.mulf %49, %54 : vector<1x32xf32>
      %c0_i32_39 = arith.constant 0 : i32
      %56 = arith.addi %35, %c0_i32_39 : i32
      %57 = arith.index_cast %56 : i32 to index
      %c0_40 = arith.constant 0 : index
      %58 = vector.load %arg11[%57, %c0_40] : memref<16x32xf32, #tpu.memory_space<vmem>>, vector<1x32xf32>
      tpu.vector_store %arg11[%57, %c0_40], %55 {strides = array<i32>} : memref<16x32xf32, #tpu.memory_space<vmem>>, vector<1x32xf32>,
      %c1_i32_41 = arith.constant 1 : i32
      %59 = arith.addi %35, %c1_i32_41 : i32
      %60 = arith.index_cast %59 : i32 to index
      %c0_42 = arith.constant 0 : index
      %61 = vector.load %arg10[%60, %c0_42] : memref<16x128xf32, #tpu.memory_space<vmem>>, vector<1x128xf32>
      %cst_43 = arith.constant dense<0.000000e+00> : vector<1x128xf32>
      %62 = tpu.matmul %55, %11, %cst_43 {dimension_numbers = #tpu.dot_dimension_numbers<[1], [0], [0], [1], [0, 0, 1, 1], [], []>} : vector<1x32xf32>, vector<32x128xf32>, vector<1x128xf32> -> vector<1x128xf32>
      %63 = arith.addf %61, %62 : vector<1x128xf32>
      %64 = arith.negf %63 : vector<1x128xf32>
      %65 = math.exp %64 : vector<1x128xf32>
      %cst_44 = arith.constant 1.000000e+00 : f32
      %66 = vector.broadcast %cst_44 : f32 to vector<1x128xf32>
      %67 = arith.addf %66, %65 : vector<1x128xf32>
      %68 = arith.divf %66, %67 : vector<1x128xf32>
      %69 = math.tanh %63 : vector<1x128xf32>
      %70 = vector.extract_strided_slice %68 {offsets = [0, 0], sizes = [1, 32], strides = [1, 1]} : vector<1x128xf32> to vector<1x32xf32>
      %71 = vector.extract_strided_slice %68 {offsets = [0, 32], sizes = [1, 32], strides = [1, 1]} : vector<1x128xf32> to vector<1x32xf32>
      %72 = vector.extract_strided_slice %68 {offsets = [0, 96], sizes = [1, 32], strides = [1, 1]} : vector<1x128xf32> to vector<1x32xf32>
      %73 = vector.extract_strided_slice %69 {offsets = [0, 64], sizes = [1, 32], strides = [1, 1]} : vector<1x128xf32> to vector<1x32xf32>
      %74 = arith.mulf %71, %53 : vector<1x32xf32>
      %75 = arith.mulf %70, %73 : vector<1x32xf32>
      %76 = arith.addf %74, %75 : vector<1x32xf32>
      %77 = math.tanh %76 : vector<1x32xf32>
      %78 = arith.mulf %72, %77 : vector<1x32xf32>
      %c1_i32_45 = arith.constant 1 : i32
      %79 = arith.addi %35, %c1_i32_45 : i32
      %80 = arith.index_cast %79 : i32 to index
      %c0_46 = arith.constant 0 : index
      %81 = vector.load %arg11[%80, %c0_46] : memref<16x32xf32, #tpu.memory_space<vmem>>, vector<1x32xf32>
      tpu.vector_store %arg11[%80, %c0_46], %78 {strides = array<i32>} : memref<16x32xf32, #tpu.memory_space<vmem>>, vector<1x32xf32>,
      %c2_i32_47 = arith.constant 2 : i32
      %82 = arith.addi %35, %c2_i32_47 : i32
      %83 = arith.index_cast %82 : i32 to index
      %c0_48 = arith.constant 0 : index
      %84 = vector.load %arg10[%83, %c0_48] : memref<16x128xf32, #tpu.memory_space<vmem>>, vector<1x128xf32>
      %cst_49 = arith.constant dense<0.000000e+00> : vector<1x128xf32>
      %85 = tpu.matmul %78, %11, %cst_49 {dimension_numbers = #tpu.dot_dimension_numbers<[1], [0], [0], [1], [0, 0, 1, 1], [], []>} : vector<1x32xf32>, vector<32x128xf32>, vector<1x128xf32> -> vector<1x128xf32>
      %86 = arith.addf %84, %85 : vector<1x128xf32>
      %87 = arith.negf %86 : vector<1x128xf32>
      %88 = math.exp %87 : vector<1x128xf32>
      %cst_50 = arith.constant 1.000000e+00 : f32
      %89 = vector.broadcast %cst_50 : f32 to vector<1x128xf32>
      %90 = arith.addf %89, %88 : vector<1x128xf32>
      %91 = arith.divf %89, %90 : vector<1x128xf32>
      %92 = math.tanh %86 : vector<1x128xf32>
      %93 = vector.extract_strided_slice %91 {offsets = [0, 0], sizes = [1, 32], strides = [1, 1]} : vector<1x128xf32> to vector<1x32xf32>
      %94 = vector.extract_strided_slice %91 {offsets = [0, 32], sizes = [1, 32], strides = [1, 1]} : vector<1x128xf32> to vector<1x32xf32>
      %95 = vector.extract_strided_slice %91 {offsets = [0, 96], sizes = [1, 32], strides = [1, 1]} : vector<1x128xf32> to vector<1x32xf32>
      %96 = vector.extract_strided_slice %92 {offsets = [0, 64], sizes = [1, 32], strides = [1, 1]} : vector<1x128xf32> to vector<1x32xf32>
      %97 = arith.mulf %94, %76 : vector<1x32xf32>
      %98 = arith.mulf %93, %96 : vector<1x32xf32>
      %99 = arith.addf %97, %98 : vector<1x32xf32>
      %100 = math.tanh %99 : vector<1x32xf32>
      %101 = arith.mulf %95, %100 : vector<1x32xf32>
      %c2_i32_51 = arith.constant 2 : i32
      %102 = arith.addi %35, %c2_i32_51 : i32
      %103 = arith.index_cast %102 : i32 to index
      %c0_52 = arith.constant 0 : index
      %104 = vector.load %arg11[%103, %c0_52] : memref<16x32xf32, #tpu.memory_space<vmem>>, vector<1x32xf32>
      tpu.vector_store %arg11[%103, %c0_52], %101 {strides = array<i32>} : memref<16x32xf32, #tpu.memory_space<vmem>>, vector<1x32xf32>,
      %c3_i32 = arith.constant 3 : i32
      %105 = arith.addi %35, %c3_i32 : i32
      %106 = arith.index_cast %105 : i32 to index
      %c0_53 = arith.constant 0 : index
      %107 = vector.load %arg10[%106, %c0_53] : memref<16x128xf32, #tpu.memory_space<vmem>>, vector<1x128xf32>
      %cst_54 = arith.constant dense<0.000000e+00> : vector<1x128xf32>
      %108 = tpu.matmul %101, %11, %cst_54 {dimension_numbers = #tpu.dot_dimension_numbers<[1], [0], [0], [1], [0, 0, 1, 1], [], []>} : vector<1x32xf32>, vector<32x128xf32>, vector<1x128xf32> -> vector<1x128xf32>
      %109 = arith.addf %107, %108 : vector<1x128xf32>
      %110 = arith.negf %109 : vector<1x128xf32>
      %111 = math.exp %110 : vector<1x128xf32>
      %cst_55 = arith.constant 1.000000e+00 : f32
      %112 = vector.broadcast %cst_55 : f32 to vector<1x128xf32>
      %113 = arith.addf %112, %111 : vector<1x128xf32>
      %114 = arith.divf %112, %113 : vector<1x128xf32>
      %115 = math.tanh %109 : vector<1x128xf32>
      %116 = vector.extract_strided_slice %114 {offsets = [0, 0], sizes = [1, 32], strides = [1, 1]} : vector<1x128xf32> to vector<1x32xf32>
      %117 = vector.extract_strided_slice %114 {offsets = [0, 32], sizes = [1, 32], strides = [1, 1]} : vector<1x128xf32> to vector<1x32xf32>
      %118 = vector.extract_strided_slice %114 {offsets = [0, 96], sizes = [1, 32], strides = [1, 1]} : vector<1x128xf32> to vector<1x32xf32>
      %119 = vector.extract_strided_slice %115 {offsets = [0, 64], sizes = [1, 32], strides = [1, 1]} : vector<1x128xf32> to vector<1x32xf32>
      %120 = arith.mulf %117, %99 : vector<1x32xf32>
      %121 = arith.mulf %116, %119 : vector<1x32xf32>
      %122 = arith.addf %120, %121 : vector<1x32xf32>
      %123 = math.tanh %122 : vector<1x32xf32>
      %124 = arith.mulf %118, %123 : vector<1x32xf32>
      %c3_i32_56 = arith.constant 3 : i32
      %125 = arith.addi %35, %c3_i32_56 : i32
      %126 = arith.index_cast %125 : i32 to index
      %c0_57 = arith.constant 0 : index
      %127 = vector.load %arg11[%126, %c0_57] : memref<16x32xf32, #tpu.memory_space<vmem>>, vector<1x32xf32>
      tpu.vector_store %arg11[%126, %c0_57], %124 {strides = array<i32>} : memref<16x32xf32, #tpu.memory_space<vmem>>, vector<1x32xf32>,
      %c4_i32 = arith.constant 4 : i32
      %128 = arith.addi %35, %c4_i32 : i32
      %129 = arith.index_cast %128 : i32 to index
      %c0_58 = arith.constant 0 : index
      %130 = vector.load %arg10[%129, %c0_58] : memref<16x128xf32, #tpu.memory_space<vmem>>, vector<1x128xf32>
      %cst_59 = arith.constant dense<0.000000e+00> : vector<1x128xf32>
      %131 = tpu.matmul %124, %11, %cst_59 {dimension_numbers = #tpu.dot_dimension_numbers<[1], [0], [0], [1], [0, 0, 1, 1], [], []>} : vector<1x32xf32>, vector<32x128xf32>, vector<1x128xf32> -> vector<1x128xf32>
      %132 = arith.addf %130, %131 : vector<1x128xf32>
      %133 = arith.negf %132 : vector<1x128xf32>
      %134 = math.exp %133 : vector<1x128xf32>
      %cst_60 = arith.constant 1.000000e+00 : f32
      %135 = vector.broadcast %cst_60 : f32 to vector<1x128xf32>
      %136 = arith.addf %135, %134 : vector<1x128xf32>
      %137 = arith.divf %135, %136 : vector<1x128xf32>
      %138 = math.tanh %132 : vector<1x128xf32>
      %139 = vector.extract_strided_slice %137 {offsets = [0, 0], sizes = [1, 32], strides = [1, 1]} : vector<1x128xf32> to vector<1x32xf32>
      %140 = vector.extract_strided_slice %137 {offsets = [0, 32], sizes = [1, 32], strides = [1, 1]} : vector<1x128xf32> to vector<1x32xf32>
      %141 = vector.extract_strided_slice %137 {offsets = [0, 96], sizes = [1, 32], strides = [1, 1]} : vector<1x128xf32> to vector<1x32xf32>
      %142 = vector.extract_strided_slice %138 {offsets = [0, 64], sizes = [1, 32], strides = [1, 1]} : vector<1x128xf32> to vector<1x32xf32>
      %143 = arith.mulf %140, %122 : vector<1x32xf32>
      %144 = arith.mulf %139, %142 : vector<1x32xf32>
      %145 = arith.addf %143, %144 : vector<1x32xf32>
      %146 = math.tanh %145 : vector<1x32xf32>
      %147 = arith.mulf %141, %146 : vector<1x32xf32>
      %c4_i32_61 = arith.constant 4 : i32
      %148 = arith.addi %35, %c4_i32_61 : i32
      %149 = arith.index_cast %148 : i32 to index
      %c0_62 = arith.constant 0 : index
      %150 = vector.load %arg11[%149, %c0_62] : memref<16x32xf32, #tpu.memory_space<vmem>>, vector<1x32xf32>
      tpu.vector_store %arg11[%149, %c0_62], %147 {strides = array<i32>} : memref<16x32xf32, #tpu.memory_space<vmem>>, vector<1x32xf32>,
      %c5_i32 = arith.constant 5 : i32
      %151 = arith.addi %35, %c5_i32 : i32
      %152 = arith.index_cast %151 : i32 to index
      %c0_63 = arith.constant 0 : index
      %153 = vector.load %arg10[%152, %c0_63] : memref<16x128xf32, #tpu.memory_space<vmem>>, vector<1x128xf32>
      %cst_64 = arith.constant dense<0.000000e+00> : vector<1x128xf32>
      %154 = tpu.matmul %147, %11, %cst_64 {dimension_numbers = #tpu.dot_dimension_numbers<[1], [0], [0], [1], [0, 0, 1, 1], [], []>} : vector<1x32xf32>, vector<32x128xf32>, vector<1x128xf32> -> vector<1x128xf32>
      %155 = arith.addf %153, %154 : vector<1x128xf32>
      %156 = arith.negf %155 : vector<1x128xf32>
      %157 = math.exp %156 : vector<1x128xf32>
      %cst_65 = arith.constant 1.000000e+00 : f32
      %158 = vector.broadcast %cst_65 : f32 to vector<1x128xf32>
      %159 = arith.addf %158, %157 : vector<1x128xf32>
      %160 = arith.divf %158, %159 : vector<1x128xf32>
      %161 = math.tanh %155 : vector<1x128xf32>
      %162 = vector.extract_strided_slice %160 {offsets = [0, 0], sizes = [1, 32], strides = [1, 1]} : vector<1x128xf32> to vector<1x32xf32>
      %163 = vector.extract_strided_slice %160 {offsets = [0, 32], sizes = [1, 32], strides = [1, 1]} : vector<1x128xf32> to vector<1x32xf32>
      %164 = vector.extract_strided_slice %160 {offsets = [0, 96], sizes = [1, 32], strides = [1, 1]} : vector<1x128xf32> to vector<1x32xf32>
      %165 = vector.extract_strided_slice %161 {offsets = [0, 64], sizes = [1, 32], strides = [1, 1]} : vector<1x128xf32> to vector<1x32xf32>
      %166 = arith.mulf %163, %145 : vector<1x32xf32>
      %167 = arith.mulf %162, %165 : vector<1x32xf32>
      %168 = arith.addf %166, %167 : vector<1x32xf32>
      %169 = math.tanh %168 : vector<1x32xf32>
      %170 = arith.mulf %164, %169 : vector<1x32xf32>
      %c5_i32_66 = arith.constant 5 : i32
      %171 = arith.addi %35, %c5_i32_66 : i32
      %172 = arith.index_cast %171 : i32 to index
      %c0_67 = arith.constant 0 : index
      %173 = vector.load %arg11[%172, %c0_67] : memref<16x32xf32, #tpu.memory_space<vmem>>, vector<1x32xf32>
      tpu.vector_store %arg11[%172, %c0_67], %170 {strides = array<i32>} : memref<16x32xf32, #tpu.memory_space<vmem>>, vector<1x32xf32>,
      %c6_i32 = arith.constant 6 : i32
      %174 = arith.addi %35, %c6_i32 : i32
      %175 = arith.index_cast %174 : i32 to index
      %c0_68 = arith.constant 0 : index
      %176 = vector.load %arg10[%175, %c0_68] : memref<16x128xf32, #tpu.memory_space<vmem>>, vector<1x128xf32>
      %cst_69 = arith.constant dense<0.000000e+00> : vector<1x128xf32>
      %177 = tpu.matmul %170, %11, %cst_69 {dimension_numbers = #tpu.dot_dimension_numbers<[1], [0], [0], [1], [0, 0, 1, 1], [], []>} : vector<1x32xf32>, vector<32x128xf32>, vector<1x128xf32> -> vector<1x128xf32>
      %178 = arith.addf %176, %177 : vector<1x128xf32>
      %179 = arith.negf %178 : vector<1x128xf32>
      %180 = math.exp %179 : vector<1x128xf32>
      %cst_70 = arith.constant 1.000000e+00 : f32
      %181 = vector.broadcast %cst_70 : f32 to vector<1x128xf32>
      %182 = arith.addf %181, %180 : vector<1x128xf32>
      %183 = arith.divf %181, %182 : vector<1x128xf32>
      %184 = math.tanh %178 : vector<1x128xf32>
      %185 = vector.extract_strided_slice %183 {offsets = [0, 0], sizes = [1, 32], strides = [1, 1]} : vector<1x128xf32> to vector<1x32xf32>
      %186 = vector.extract_strided_slice %183 {offsets = [0, 32], sizes = [1, 32], strides = [1, 1]} : vector<1x128xf32> to vector<1x32xf32>
      %187 = vector.extract_strided_slice %183 {offsets = [0, 96], sizes = [1, 32], strides = [1, 1]} : vector<1x128xf32> to vector<1x32xf32>
      %188 = vector.extract_strided_slice %184 {offsets = [0, 64], sizes = [1, 32], strides = [1, 1]} : vector<1x128xf32> to vector<1x32xf32>
      %189 = arith.mulf %186, %168 : vector<1x32xf32>
      %190 = arith.mulf %185, %188 : vector<1x32xf32>
      %191 = arith.addf %189, %190 : vector<1x32xf32>
      %192 = math.tanh %191 : vector<1x32xf32>
      %193 = arith.mulf %187, %192 : vector<1x32xf32>
      %c6_i32_71 = arith.constant 6 : i32
      %194 = arith.addi %35, %c6_i32_71 : i32
      %195 = arith.index_cast %194 : i32 to index
      %c0_72 = arith.constant 0 : index
      %196 = vector.load %arg11[%195, %c0_72] : memref<16x32xf32, #tpu.memory_space<vmem>>, vector<1x32xf32>
      tpu.vector_store %arg11[%195, %c0_72], %193 {strides = array<i32>} : memref<16x32xf32, #tpu.memory_space<vmem>>, vector<1x32xf32>,
      %c7_i32 = arith.constant 7 : i32
      %197 = arith.addi %35, %c7_i32 : i32
      %198 = arith.index_cast %197 : i32 to index
      %c0_73 = arith.constant 0 : index
      %199 = vector.load %arg10[%198, %c0_73] : memref<16x128xf32, #tpu.memory_space<vmem>>, vector<1x128xf32>
      %cst_74 = arith.constant dense<0.000000e+00> : vector<1x128xf32>
      %200 = tpu.matmul %193, %11, %cst_74 {dimension_numbers = #tpu.dot_dimension_numbers<[1], [0], [0], [1], [0, 0, 1, 1], [], []>} : vector<1x32xf32>, vector<32x128xf32>, vector<1x128xf32> -> vector<1x128xf32>
      %201 = arith.addf %199, %200 : vector<1x128xf32>
      %202 = arith.negf %201 : vector<1x128xf32>
      %203 = math.exp %202 : vector<1x128xf32>
      %cst_75 = arith.constant 1.000000e+00 : f32
      %204 = vector.broadcast %cst_75 : f32 to vector<1x128xf32>
      %205 = arith.addf %204, %203 : vector<1x128xf32>
      %206 = arith.divf %204, %205 : vector<1x128xf32>
      %207 = math.tanh %201 : vector<1x128xf32>
      %208 = vector.extract_strided_slice %206 {offsets = [0, 0], sizes = [1, 32], strides = [1, 1]} : vector<1x128xf32> to vector<1x32xf32>
      %209 = vector.extract_strided_slice %206 {offsets = [0, 32], sizes = [1, 32], strides = [1, 1]} : vector<1x128xf32> to vector<1x32xf32>
      %210 = vector.extract_strided_slice %206 {offsets = [0, 96], sizes = [1, 32], strides = [1, 1]} : vector<1x128xf32> to vector<1x32xf32>
      %211 = vector.extract_strided_slice %207 {offsets = [0, 64], sizes = [1, 32], strides = [1, 1]} : vector<1x128xf32> to vector<1x32xf32>
      %212 = arith.mulf %209, %191 : vector<1x32xf32>
      %213 = arith.mulf %208, %211 : vector<1x32xf32>
      %214 = arith.addf %212, %213 : vector<1x32xf32>
      %215 = math.tanh %214 : vector<1x32xf32>
      %216 = arith.mulf %210, %215 : vector<1x32xf32>
      %c7_i32_76 = arith.constant 7 : i32
      %217 = arith.addi %35, %c7_i32_76 : i32
      %218 = arith.index_cast %217 : i32 to index
      %c0_77 = arith.constant 0 : index
      %219 = vector.load %arg11[%218, %c0_77] : memref<16x32xf32, #tpu.memory_space<vmem>>, vector<1x32xf32>
      tpu.vector_store %arg11[%218, %c0_77], %216 {strides = array<i32>} : memref<16x32xf32, #tpu.memory_space<vmem>>, vector<1x32xf32>,
      scf.yield %216, %214 : vector<1x32xf32>, vector<1x32xf32>
    }
    %c2_i32_15 = arith.constant 2 : i32
    %c0_16 = arith.constant 0 : index
    %c0_17 = arith.constant 0 : index
    %16 = vector.load %arg12[%c0_16, %c0_17] : memref<1x32xf32, #tpu.memory_space<vmem>>, vector<1x32xf32>
    tpu.vector_store %arg12[%c0_16, %c0_17], %15#0 {strides = array<i32>} : memref<1x32xf32, #tpu.memory_space<vmem>>, vector<1x32xf32>,
    %c0_18 = arith.constant 0 : index
    %c0_19 = arith.constant 0 : index
    %17 = vector.load %arg13[%c0_18, %c0_19] : memref<1x32xf32, #tpu.memory_space<vmem>>, vector<1x32xf32>
    tpu.vector_store %arg13[%c0_18, %c0_19], %15#1 {strides = array<i32>} : memref<1x32xf32, #tpu.memory_space<vmem>>, vector<1x32xf32>,
    %c0_20 = arith.constant 0 : index
    %c0_21 = arith.constant 0 : index
    %18 = vector.load %arg11[%c0_20, %c0_21] : memref<16x32xf32, #tpu.memory_space<vmem>>, vector<16x32xf32>
    %19 = arith.truncf %18 : vector<16x32xf32> to vector<16x32xbf16>
    %c0_22 = arith.constant 0 : index
    %c0_23 = arith.constant 0 : index
    %20 = vector.load %arg5[%c0_22, %c0_23] : memref<32x32xbf16, #tpu.memory_space<vmem>>, vector<32x32xbf16>
    %cst_24 = arith.constant dense<0.000000e+00> : vector<16x32xf32>
    %21 = tpu.matmul %19, %20, %cst_24 {dimension_numbers = #tpu.dot_dimension_numbers<[1], [0], [0], [1], [0, 0, 1, 1], [], []>} : vector<16x32xbf16>, vector<32x32xbf16>, vector<16x32xf32> -> vector<16x32xf32>
    %c0_25 = arith.constant 0 : index
    %c0_26 = arith.constant 0 : index
    %22 = vector.load %arg6[%c0_25, %c0_26] : memref<1x32xf32, #tpu.memory_space<vmem>>, vector<1x32xf32>
    %23 = vector.broadcast %22 : vector<1x32xf32> to vector<16x32xf32>
    %24 = arith.addf %21, %23 : vector<16x32xf32>
    %cst_27 = arith.constant 0.000000e+00 : f32
    %25 = vector.broadcast %cst_27 : f32 to vector<16x32xf32>
    %26 = arith.maximumf %24, %25 : vector<16x32xf32>
    %27 = arith.truncf %26 : vector<16x32xf32> to vector<16x32xbf16>
    %c0_28 = arith.constant 0 : index
    %c0_29 = arith.constant 0 : index
    %28 = vector.load %arg7[%c0_28, %c0_29] : memref<32x128xbf16, #tpu.memory_space<vmem>>, vector<32x128xbf16>
    %cst_30 = arith.constant dense<0.000000e+00> : vector<16x128xf32>
    %29 = tpu.matmul %27, %28, %cst_30 {dimension_numbers = #tpu.dot_dimension_numbers<[1], [0], [0], [1], [0, 0, 1, 1], [], []>} : vector<16x32xbf16>, vector<32x128xbf16>, vector<16x128xf32> -> vector<16x128xf32>
    %c0_31 = arith.constant 0 : index
    %c0_32 = arith.constant 0 : index
    %30 = vector.load %arg8[%c0_31, %c0_32] : memref<1x128xf32, #tpu.memory_space<vmem>>, vector<1x128xf32>
    %31 = vector.broadcast %30 : vector<1x128xf32> to vector<16x128xf32>
    %32 = arith.addf %29, %31 : vector<16x128xf32>
    %c0_33 = arith.constant 0 : index
    %c0_34 = arith.constant 0 : index
    %33 = vector.load %arg9[%c0_33, %c0_34] : memref<16x128xf32, #tpu.memory_space<vmem>>, vector<16x128xf32>
    tpu.vector_store %arg9[%c0_33, %c0_34], %32 {strides = array<i32>} : memref<16x128xf32, #tpu.memory_space<vmem>>, vector<16x128xf32>,
    return
  }
  func.func @transform_0(%arg0: i32) -> (i32, i32) {
    %c0_i32 = arith.constant 0 : i32
    %c0_i32_0 = arith.constant 0 : i32
    return %arg0, %c0_i32 : i32, i32
  }
  func.func @transform_1(%arg0: i32) -> (i32, i32) {
    %c0_i32 = arith.constant 0 : i32
    %c0_i32_0 = arith.constant 0 : i32
    %c0_i32_1 = arith.constant 0 : i32
    return %c0_i32, %c0_i32_0 : i32, i32
  }
  func.func @transform_2(%arg0: i32) -> (i32, i32) {
    %c0_i32 = arith.constant 0 : i32
    %c0_i32_0 = arith.constant 0 : i32
    %c0_i32_1 = arith.constant 0 : i32
    return %c0_i32, %c0_i32_0 : i32, i32
  }
  func.func @transform_3(%arg0: i32) -> (i32, i32) {
    %c0_i32 = arith.constant 0 : i32
    %c0_i32_0 = arith.constant 0 : i32
    %c0_i32_1 = arith.constant 0 : i32
    return %c0_i32, %c0_i32_0 : i32, i32
  }
  func.func @transform_4(%arg0: i32) -> (i32, i32) {
    %c0_i32 = arith.constant 0 : i32
    %c0_i32_0 = arith.constant 0 : i32
    %c0_i32_1 = arith.constant 0 : i32
    return %c0_i32, %c0_i32_0 : i32, i32
  }
  func.func @transform_5(%arg0: i32) -> (i32, i32) {
    %c0_i32 = arith.constant 0 : i32
    %c0_i32_0 = arith.constant 0 : i32
    %c0_i32_1 = arith.constant 0 : i32
    return %c0_i32, %c0_i32_0 : i32, i32
  }
  func.func @transform_6(%arg0: i32) -> (i32, i32) {
    %c0_i32 = arith.constant 0 : i32
    %c0_i32_0 = arith.constant 0 : i32
    %c0_i32_1 = arith.constant 0 : i32
    return %c0_i32, %c0_i32_0 : i32, i32
  }
  func.func @transform_7(%arg0: i32) -> (i32, i32) {
    %c0_i32 = arith.constant 0 : i32
    %c0_i32_0 = arith.constant 0 : i32
    %c0_i32_1 = arith.constant 0 : i32
    return %c0_i32, %c0_i32_0 : i32, i32
  }
  func.func @transform_8(%arg0: i32) -> (i32, i32) {
    %c0_i32 = arith.constant 0 : i32
    %c0_i32_0 = arith.constant 0 : i32
    return %arg0, %c0_i32 : i32, i32
  }
}

</mosaic_0001>

<llo_original>
// kernel: tpu_custom_call.1
$region0: #{tpu_custom_call.1}
  #allocation0 [shape = 'u32[]', space=smem, size = 0x4, offset = 0x4, fixed_abs, tag = 'smem constant byte address 0x4 - core index']
  #allocation1 [shape = 'u32[72,128]{1,0:T(1,128)}', space=vmem, size = 0x9000, scoped, tag = 'internal scratch']
  #allocation2 [shape = 'f32[16,128]{1,0:T(8,128)}', space=vmem, size = 0x2000, scoped, tag = 'scratch operand']
  #allocation3 [shape = 'f32[16,32]{1,0:T(8,128)}', space=vmem, size = 0x2000, scoped, tag = 'scratch operand']
  #allocation4 [shape = 'f32[1,32]{1,0:T(1,128)}', space=vmem, size = 0x200, scoped, tag = 'scratch operand']
  #allocation5 [shape = 'f32[1,32]{1,0:T(1,128)}', space=vmem, size = 0x200, scoped, tag = 'scratch operand']
  %s0 = inlined_call_operand.vmem [shape: f32[16,4], index: 0, kind: input, shape index: {}]
  %s1 = inlined_call_operand.vmem [shape: bf16[4,128], index: 1, kind: input, shape index: {}]
  %s2 = inlined_call_operand.hbm [shape: f32[32,128], index: 2, kind: input, shape index: {}]
  %s3 = inlined_call_operand.vmem [shape: f32[1,128], index: 3, kind: input, shape index: {}]
  %s4 = inlined_call_operand.vmem [shape: bf16[32,32], index: 4, kind: input, shape index: {}]
  %s5 = inlined_call_operand.vmem [shape: f32[1,32], index: 5, kind: input, shape index: {}]
  %s6 = inlined_call_operand.hbm [shape: bf16[32,128], index: 6, kind: input, shape index: {}]
  %s7 = inlined_call_operand.vmem [shape: f32[1,128], index: 7, kind: input, shape index: {}]
  %s8 = inlined_call_operand.hbm [shape: f32[16,128], index: 8, kind: output, shape index: {}]
  %s9 = sld [smem:[#allocation0]]
  $region61: #{tpu_custom_call.1} parent=0
    _
  %s11 = ssub.s32 1, %s9
  %s12 = scalar_select 0, %s11, %s9
  $region1: #{tpu_custom_call.1} parent=0
    #allocation6 [shape = 'u8[16384]{0}', space=vmem, size = 0x4000, scoped, tag = 'input window, operand 2, single buffered']
    #allocation7 [shape = 's32[1]{0}', space=sflag, size = 0x4, scoped, tag = 'scoped memory for tpu_custom_call.1']
    #allocation8 [shape = 's32[1]{0}', space=sflag, size = 0x4, scoped, tag = 'scoped memory for tpu_custom_call.1']
    #allocation9 [shape = 'u8[8192]{0}', space=vmem, size = 0x2000, scoped, tag = 'input window, operand 6, single buffered']
    #allocation10 [shape = 's32[1]{0}', space=sflag, size = 0x4, scoped, tag = 'scoped memory for tpu_custom_call.1']
    #allocation11 [shape = 'u8[8192]{0}', space=vmem, size = 0x2000, scoped, tag = 'output window, operand 0, single buffered']
    %13 = vsyncpa [#allocation7], 0
    %14 = vsyncpa [#allocation10], 0
    %15 = vsyncpa [#allocation8], 0
    // Predicated region
    $region2: #{tpu_custom_call.1} parent=1 // pred_check
      _
    $region3: #{tpu_custom_call.1} parent=1 // pred_check_branch
      %17 = sbr.rel (0) target = $region5
    $region4: #{tpu_custom_call.1} parent=1 // pred_region
      _
    $region5: #{tpu_custom_call.1} parent=1 // pred_fallthru
      _
    // Predicated region
    $region6: #{tpu_custom_call.1} parent=1 // pred_check
      _
    $region7: #{tpu_custom_call.1} parent=1 // pred_check_branch
      %19 = sbr.rel (0) target = $region9
    $region8: #{tpu_custom_call.1} parent=1 // pred_region
      _
    $region9: #{tpu_custom_call.1} parent=1 // pred_fallthru
      _
    // Predicated region
    $region10: #{tpu_custom_call.1} parent=1 // pred_check
      _
    $region11: #{tpu_custom_call.1} parent=1 // pred_check_branch
      %21 = sbr.rel (0) target = $region13
    $region12: #{tpu_custom_call.1} parent=1 // pred_region
      %23 = vsyncadd [#allocation7], 0
      %s24 = sshll.u32 %s2, 4
      %s25 = int_to_ptr.hbm [resolvable:$true] %s24
      %s26 = sshll.u32 [#allocation6], 4
      %s27 = int_to_ptr.vmem [resolvable:$true] %s26
      %32 = dma.hbm_to_vmem [thread:$0]  %s25, 512, %s27, [#allocation7], 128, 128, 8
    $region13: #{tpu_custom_call.1} parent=1 // pred_fallthru
      _
    // Predicated region
    $region14: #{tpu_custom_call.1} parent=1 // pred_check
      _
    $region15: #{tpu_custom_call.1} parent=1 // pred_check_branch
      %34 = sbr.rel (0) target = $region17
    $region16: #{tpu_custom_call.1} parent=1 // pred_region
      _
    $region17: #{tpu_custom_call.1} parent=1 // pred_fallthru
      _
    // Predicated region
    $region18: #{tpu_custom_call.1} parent=1 // pred_check
      _
    $region19: #{tpu_custom_call.1} parent=1 // pred_check_branch
      %36 = sbr.rel (0) target = $region21
    $region20: #{tpu_custom_call.1} parent=1 // pred_region
      _
    $region21: #{tpu_custom_call.1} parent=1 // pred_fallthru
      _
    // Predicated region
    $region22: #{tpu_custom_call.1} parent=1 // pred_check
      _
    $region23: #{tpu_custom_call.1} parent=1 // pred_check_branch
      %38 = sbr.rel (0) target = $region25
    $region24: #{tpu_custom_call.1} parent=1 // pred_region
      _
    $region25: #{tpu_custom_call.1} parent=1 // pred_fallthru
      _
    // Predicated region
    $region26: #{tpu_custom_call.1} parent=1 // pred_check
      _
    $region27: #{tpu_custom_call.1} parent=1 // pred_check_branch
      %40 = sbr.rel (0) target = $region29
    $region28: #{tpu_custom_call.1} parent=1 // pred_region
      %42 = vsyncadd [#allocation10], 0
      %s43 = sshll.u32 %s6, 4
      %s44 = int_to_ptr.hbm [resolvable:$true] %s43
      %s45 = sshll.u32 [#allocation9], 4
      %s46 = int_to_ptr.vmem [resolvable:$true] %s45
      %51 = dma.hbm_to_vmem [thread:$0]  %s44, 256, %s46, [#allocation10], 64, 64, 4
    $region29: #{tpu_custom_call.1} parent=1 // pred_fallthru
      _
    // Predicated region
    $region30: #{tpu_custom_call.1} parent=1 // pred_check
      _
    $region31: #{tpu_custom_call.1} parent=1 // pred_check_branch
      %53 = sbr.rel (0) target = $region33
    $region32: #{tpu_custom_call.1} parent=1 // pred_region
      _
    $region33: #{tpu_custom_call.1} parent=1 // pred_fallthru
      _
    // Predicated region
    $region34: #{tpu_custom_call.1} parent=1 // pred_check
      _
    $region35: #{tpu_custom_call.1} parent=1 // pred_check_branch
      %55 = sbr.rel (0) target = $region37
    $region36: #{tpu_custom_call.1} parent=1 // pred_region
      %57 = dma.done [#allocation7], 512
    $region37: #{tpu_custom_call.1} parent=1 // pred_fallthru
      _
    // Predicated region
    $region38: #{tpu_custom_call.1} parent=1 // pred_check
      _
    $region39: #{tpu_custom_call.1} parent=1 // pred_check_branch
      %59 = sbr.rel (0) target = $region41
    $region40: #{tpu_custom_call.1} parent=1 // pred_region
      %61 = dma.done [#allocation10], 256
    $region41: #{tpu_custom_call.1} parent=1 // pred_fallthru
      _
    %p63 = scmp.eq.s32.totalorder 0, 0
    // Predicated region
    $region42: #{tpu_custom_call.1} parent=1 // pred_check
      %p64 = pneg %p63
    $region43: #{tpu_custom_call.1} parent=1 // pred_check_branch
      %66 = sbr.rel (%p64) target = $region45
    $region44: #{tpu_custom_call.1} parent=1 // pred_region
      %vm67 = vcmask 253952
      %68 = vst.msk [vmem:[#allocation4] sm:$0x1] %vm67, 0.0
      %69 = vst.msk [vmem:[#allocation5] sm:$0x1] %vm67, 0.0
    $region45: #{tpu_custom_call.1} parent=1 // pred_fallthru
      _
    %v70 = vld [vmem:[%s0] sm:$0xff]
    %v71 = vld [vmem:[%s0 + $0x8] sm:$0xff]
    %v72 = vpack.c.bf16 %v71, %v70
    %v73 = vld [vmem:[%s1] sm:$0x3]
    %v74 = vld [vmem:[%s3] sm:$0x1]
    %v76 = vperm.slane %v74, 0
    %vm78 = vcmask 31744
    %v80 = vsel %vm78, %v72, 0
    %vm82 = vcmask 1041408
    %v84 = vsel %vm82, %v73, 0
    %86 = vmatpush.bf16.msra.mxu0 0
    %87 = vmatpush.bf16.msra.mxu0 0
    %88 = vmatpush.bf16.msra.mxu0 0
    %89 = vmatpush.bf16.msra.mxu0 0
    %90 = vmatpush.bf16.msra.mxu0 0
    %91 = vmatpush.bf16.msra.mxu0 0
    %92 = vmatpush.bf16.msra.mxu0 0
    %93 = vmatpush.bf16.msra.mxu0 %v84
    %94 = vmatmul.bf16.gmra.mxu0 %v80
    %v95 = vpop.f32.mrf.mxu0
    %v96 = vadd.f32 %v76, %v95
    %v97 = vpop.f32.mrf.mxu0
    %v98 = vadd.f32 %v76, %v97
    %99 = vdwg.mxu0
    %100 = vst [vmem:[#allocation2] sm:$0xff] %v96
    %101 = vst [vmem:[#allocation2 + $0x8] sm:$0xff] %v98
    %v102 = vld [vmem:[#allocation6] sm:$0xff]
    %v103 = vld [vmem:[#allocation6 + $0x8] sm:$0xff]
    %v104 = vld [vmem:[#allocation6 + $0x10] sm:$0xff]
    %v105 = vld [vmem:[#allocation6 + $0x18] sm:$0xff]
    %v106 = vld [vmem:[#allocation4] sm:$0x1]
    %v107 = vld [vmem:[#allocation5] sm:$0x1]
    loop: start=0, step=1, limit=2
    $region46: #{tpu_custom_call.1} parent=1 // loop_pre_header
      _
    $region47: #{tpu_custom_call.1} parent=1 // loop_header
      %s109 = sphi 0, %s113
      %p110 = scmp.ge.s32.totalorder %s109, 2
      %v114 = vphi %v106, %v671
      %v115 = vphi %v107, %v677
    $region48: #{tpu_custom_call.1} parent=1 // loop_header_branch
      %112 = sbr.rel (%p110) target = $region52
    $region49: #{tpu_custom_call.1} parent=1 // loop_body
      %s116 = smul.u32 %s109, 8
      %s117 = scalar_lea.vmem [#allocation2], %s116
      %v118 = vld [vmem:[%s117] sm:$0x1]
      %vm119 = vcmask 261120
      %v121 = vsel %vm119, %v114, 0
      %123 = vmatpush.msra.mxu0 0.0
      %124 = vmatpush.msra.mxu0 0.0
      %125 = vmatpush.msra.mxu0 0.0
      %126 = vmatpush.msra.mxu0 0.0
      %127 = vmatpush.msra.mxu0 0.0
      %128 = vmatpush.msra.mxu0 0.0
      %129 = vmatpush.msra.mxu0 0.0
      %130 = vmatpush.msra.mxu0 0.0
      %131 = vmatpush.msra.mxu0 0.0
      %132 = vmatpush.msra.mxu0 0.0
      %133 = vmatpush.msra.mxu0 0.0
      %134 = vmatpush.msra.mxu0 0.0
      %135 = vmatpush.msra.mxu0 %v105
      %136 = vmatpush.msra.mxu0 %v104
      %137 = vmatpush.msra.mxu0 %v103
      %138 = vmatpush.msra.mxu0 %v102
      %139 = vmatmul.f32.gmra.mxu0 %v121
      %v140 = vpop.f32.mrf.mxu0
      %v141 = vadd.f32 0.0, %v140
      %142 = vdwg.mxu0
      %v143 = vadd.f32 %v118, %v141
      %v144 = vxor.u32 %v143, 2147483648
      %v145 = vmul.f32 %v144, 1.442695
      %v146 = vpow.pop %v145
      %v147 = vadd.f32 %v146, 1.0
      %v148 = vrcp.pop %v147
      %v149 = vmul.f32 %v147, %v148
      %v150 = vsub.f32 1.0, %v149
      %v151 = vmul.f32 %v148, %v150
      %v152 = vadd.f32 %v148, %v151
      %vm153 = vweird.f32 %v147
      %vm154 = vweird.f32 %v148
      %vm155 = vmor %vm153, %vm154
      %v156 = vsel %vm155, %v148, %v152
      %v157 = vand.u32 2147483647, %v147
      %vm158 = vcmp.eq.f32.partialorder %v157, 8.507059e+37
      %v159 = vand.u32 %v147, 2147483648
      %v160 = vor.u32 1.1754944e-38, %v159
      %v161 = vsel %vm158, %v160, %v156
      %v162 = vmul.f32 1.0, %v161
      %v163 = vtanh.pop %v143
      %165 = vrot.lane.b32.xlu0 %v115, 32
      %v166 = vpop.permute.xlu0 %165
      %v168 = vmul.f32 %v162, %v166
      %170 = vrot.lane.b32.xlu0 %v163, 64
      %v171 = vpop.permute.xlu0 %170
      %v173 = vmul.f32 %v162, %v171
      %175 = vrot.lane.b32.xlu0 %v173, 32
      %v176 = vpop.permute.xlu0 %175
      %v178 = vadd.f32 %v168, %v176
      %v179 = vtanh.pop %v178
      %181 = vrot.lane.b32.xlu0 %v179, 64
      %v182 = vpop.permute.xlu0 %181
      %v184 = vmul.f32 %v162, %v182
      %186 = vrot.lane.b32.xlu0 %v184, 32
      %v187 = vpop.permute.xlu0 %186
      %s189 = scalar_lea.vmem [#allocation3], %s116
      %vm190 = vcmask 253952
      %191 = vst.msk [vmem:[%s189] sm:$0x1] %vm190, %v187
      %s192 = sadd.s32 %s116, 1
      %s193 = scalar_lea.vmem [#allocation2], %s192
      %v194 = vld [vmem:[%s193] sm:$0x1]
      %v195 = vsel %vm119, %v187, 0
      %197 = vmatpush.msra.mxu0 0.0
      %198 = vmatpush.msra.mxu0 0.0
      %199 = vmatpush.msra.mxu0 0.0
      %200 = vmatpush.msra.mxu0 0.0
      %201 = vmatpush.msra.mxu0 0.0
      %202 = vmatpush.msra.mxu0 0.0
      %203 = vmatpush.msra.mxu0 0.0
      %204 = vmatpush.msra.mxu0 0.0
      %205 = vmatpush.msra.mxu0 0.0
      %206 = vmatpush.msra.mxu0 0.0
      %207 = vmatpush.msra.mxu0 0.0
      %208 = vmatpush.msra.mxu0 0.0
      %209 = vmatpush.msra.mxu0 %v105
      %210 = vmatpush.msra.mxu0 %v104
      %211 = vmatpush.msra.mxu0 %v103
      %212 = vmatpush.msra.mxu0 %v102
      %213 = vmatmul.f32.gmra.mxu0 %v195
      %v214 = vpop.f32.mrf.mxu0
      %v215 = vadd.f32 0.0, %v214
      %216 = vdwg.mxu0
      %v217 = vadd.f32 %v194, %v215
      %v218 = vxor.u32 %v217, 2147483648
      %v219 = vmul.f32 %v218, 1.442695
      %v220 = vpow.pop %v219
      %v221 = vadd.f32 %v220, 1.0
      %v222 = vrcp.pop %v221
      %v223 = vmul.f32 %v221, %v222
      %v224 = vsub.f32 1.0, %v223
      %v225 = vmul.f32 %v222, %v224
      %v226 = vadd.f32 %v222, %v225
      %vm227 = vweird.f32 %v221
      %vm228 = vweird.f32 %v222
      %vm229 = vmor %vm227, %vm228
      %v230 = vsel %vm229, %v222, %v226
      %v231 = vand.u32 2147483647, %v221
      %vm232 = vcmp.eq.f32.partialorder %v231, 8.507059e+37
      %v233 = vand.u32 %v221, 2147483648
      %v234 = vor.u32 1.1754944e-38, %v233
      %v235 = vsel %vm232, %v234, %v230
      %v236 = vmul.f32 1.0, %v235
      %v237 = vtanh.pop %v217
      %v238 = vmul.f32 %v236, %v178
      %240 = vrot.lane.b32.xlu0 %v237, 64
      %v241 = vpop.permute.xlu0 %240
      %v243 = vmul.f32 %v236, %v241
      %245 = vrot.lane.b32.xlu0 %v243, 32
      %v246 = vpop.permute.xlu0 %245
      %v248 = vadd.f32 %v238, %v246
      %v249 = vtanh.pop %v248
      %251 = vrot.lane.b32.xlu0 %v249, 64
      %v252 = vpop.permute.xlu0 %251
      %v254 = vmul.f32 %v236, %v252
      %256 = vrot.lane.b32.xlu0 %v254, 32
      %v257 = vpop.permute.xlu0 %256
      %s259 = scalar_lea.vmem [#allocation3], %s192
      %260 = vst.msk [vmem:[%s259] sm:$0x1] %vm190, %v257
      %s261 = sadd.s32 %s116, 2
      %s262 = scalar_lea.vmem [#allocation2], %s261
      %v263 = vld [vmem:[%s262] sm:$0x1]
      %v264 = vsel %vm119, %v257, 0
      %266 = vmatpush.msra.mxu0 0.0
      %267 = vmatpush.msra.mxu0 0.0
      %268 = vmatpush.msra.mxu0 0.0
      %269 = vmatpush.msra.mxu0 0.0
      %270 = vmatpush.msra.mxu0 0.0
      %271 = vmatpush.msra.mxu0 0.0
      %272 = vmatpush.msra.mxu0 0.0
      %273 = vmatpush.msra.mxu0 0.0
      %274 = vmatpush.msra.mxu0 0.0
      %275 = vmatpush.msra.mxu0 0.0
      %276 = vmatpush.msra.mxu0 0.0
      %277 = vmatpush.msra.mxu0 0.0
      %278 = vmatpush.msra.mxu0 %v105
      %279 = vmatpush.msra.mxu0 %v104
      %280 = vmatpush.msra.mxu0 %v103
      %281 = vmatpush.msra.mxu0 %v102
      %282 = vmatmul.f32.gmra.mxu0 %v264
      %v283 = vpop.f32.mrf.mxu0
      %v284 = vadd.f32 0.0, %v283
      %285 = vdwg.mxu0
      %v286 = vadd.f32 %v263, %v284
      %v287 = vxor.u32 %v286, 2147483648
      %v288 = vmul.f32 %v287, 1.442695
      %v289 = vpow.pop %v288
      %v290 = vadd.f32 %v289, 1.0
      %v291 = vrcp.pop %v290
      %v292 = vmul.f32 %v290, %v291
      %v293 = vsub.f32 1.0, %v292
      %v294 = vmul.f32 %v291, %v293
      %v295 = vadd.f32 %v291, %v294
      %vm296 = vweird.f32 %v290
      %vm297 = vweird.f32 %v291
      %vm298 = vmor %vm296, %vm297
      %v299 = vsel %vm298, %v291, %v295
      %v300 = vand.u32 2147483647, %v290
      %vm301 = vcmp.eq.f32.partialorder %v300, 8.507059e+37
      %v302 = vand.u32 %v290, 2147483648
      %v303 = vor.u32 1.1754944e-38, %v302
      %v304 = vsel %vm301, %v303, %v299
      %v305 = vmul.f32 1.0, %v304
      %v306 = vtanh.pop %v286
      %v307 = vmul.f32 %v305, %v248
      %309 = vrot.lane.b32.xlu0 %v306, 64
      %v310 = vpop.permute.xlu0 %309
      %v312 = vmul.f32 %v305, %v310
      %314 = vrot.lane.b32.xlu0 %v312, 32
      %v315 = vpop.permute.xlu0 %314
      %v317 = vadd.f32 %v307, %v315
      %v318 = vtanh.pop %v317
      %320 = vrot.lane.b32.xlu0 %v318, 64
      %v321 = vpop.permute.xlu0 %320
      %v323 = vmul.f32 %v305, %v321
      %325 = vrot.lane.b32.xlu0 %v323, 32
      %v326 = vpop.permute.xlu0 %325
      %s328 = scalar_lea.vmem [#allocation3], %s261
      %329 = vst.msk [vmem:[%s328] sm:$0x1] %vm190, %v326
      %s330 = sadd.s32 %s116, 3
      %s331 = scalar_lea.vmem [#allocation2], %s330
      %v332 = vld [vmem:[%s331] sm:$0x1]
      %v333 = vsel %vm119, %v326, 0
      %335 = vmatpush.msra.mxu0 0.0
      %336 = vmatpush.msra.mxu0 0.0
      %337 = vmatpush.msra.mxu0 0.0
      %338 = vmatpush.msra.mxu0 0.0
      %339 = vmatpush.msra.mxu0 0.0
      %340 = vmatpush.msra.mxu0 0.0
      %341 = vmatpush.msra.mxu0 0.0
      %342 = vmatpush.msra.mxu0 0.0
      %343 = vmatpush.msra.mxu0 0.0
      %344 = vmatpush.msra.mxu0 0.0
      %345 = vmatpush.msra.mxu0 0.0
      %346 = vmatpush.msra.mxu0 0.0
      %347 = vmatpush.msra.mxu0 %v105
      %348 = vmatpush.msra.mxu0 %v104
      %349 = vmatpush.msra.mxu0 %v103
      %350 = vmatpush.msra.mxu0 %v102
      %351 = vmatmul.f32.gmra.mxu0 %v333
      %v352 = vpop.f32.mrf.mxu0
      %v353 = vadd.f32 0.0, %v352
      %354 = vdwg.mxu0
      %v355 = vadd.f32 %v332, %v353
      %v356 = vxor.u32 %v355, 2147483648
      %v357 = vmul.f32 %v356, 1.442695
      %v358 = vpow.pop %v357
      %v359 = vadd.f32 %v358, 1.0
      %v360 = vrcp.pop %v359
      %v361 = vmul.f32 %v359, %v360
      %v362 = vsub.f32 1.0, %v361
      %v363 = vmul.f32 %v360, %v362
      %v364 = vadd.f32 %v360, %v363
      %vm365 = vweird.f32 %v359
      %vm366 = vweird.f32 %v360
      %vm367 = vmor %vm365, %vm366
      %v368 = vsel %vm367, %v360, %v364
      %v369 = vand.u32 2147483647, %v359
      %vm370 = vcmp.eq.f32.partialorder %v369, 8.507059e+37
      %v371 = vand.u32 %v359, 2147483648
      %v372 = vor.u32 1.1754944e-38, %v371
      %v373 = vsel %vm370, %v372, %v368
      %v374 = vmul.f32 1.0, %v373
      %v375 = vtanh.pop %v355
      %v376 = vmul.f32 %v374, %v317
      %378 = vrot.lane.b32.xlu0 %v375, 64
      %v379 = vpop.permute.xlu0 %378
      %v381 = vmul.f32 %v374, %v379
      %383 = vrot.lane.b32.xlu0 %v381, 32
      %v384 = vpop.permute.xlu0 %383
      %v386 = vadd.f32 %v376, %v384
      %v387 = vtanh.pop %v386
      %389 = vrot.lane.b32.xlu0 %v387, 64
      %v390 = vpop.permute.xlu0 %389
      %v392 = vmul.f32 %v374, %v390
      %394 = vrot.lane.b32.xlu0 %v392, 32
      %v395 = vpop.permute.xlu0 %394
      %s397 = scalar_lea.vmem [#allocation3], %s330
      %398 = vst.msk [vmem:[%s397] sm:$0x1] %vm190, %v395
      %s399 = sadd.s32 %s116, 4
      %s400 = scalar_lea.vmem [#allocation2], %s399
      %v401 = vld [vmem:[%s400] sm:$0x1]
      %v402 = vsel %vm119, %v395, 0
      %404 = vmatpush.msra.mxu0 0.0
      %405 = vmatpush.msra.mxu0 0.0
      %406 = vmatpush.msra.mxu0 0.0
      %407 = vmatpush.msra.mxu0 0.0
      %408 = vmatpush.msra.mxu0 0.0
      %409 = vmatpush.msra.mxu0 0.0
      %410 = vmatpush.msra.mxu0 0.0
      %411 = vmatpush.msra.mxu0 0.0
      %412 = vmatpush.msra.mxu0 0.0
      %413 = vmatpush.msra.mxu0 0.0
      %414 = vmatpush.msra.mxu0 0.0
      %415 = vmatpush.msra.mxu0 0.0
      %416 = vmatpush.msra.mxu0 %v105
      %417 = vmatpush.msra.mxu0 %v104
      %418 = vmatpush.msra.mxu0 %v103
      %419 = vmatpush.msra.mxu0 %v102
      %420 = vmatmul.f32.gmra.mxu0 %v402
      %v421 = vpop.f32.mrf.mxu0
      %v422 = vadd.f32 0.0, %v421
      %423 = vdwg.mxu0
      %v424 = vadd.f32 %v401, %v422
      %v425 = vxor.u32 %v424, 2147483648
      %v426 = vmul.f32 %v425, 1.442695
      %v427 = vpow.pop %v426
      %v428 = vadd.f32 %v427, 1.0
      %v429 = vrcp.pop %v428
      %v430 = vmul.f32 %v428, %v429
      %v431 = vsub.f32 1.0, %v430
      %v432 = vmul.f32 %v429, %v431
      %v433 = vadd.f32 %v429, %v432
      %vm434 = vweird.f32 %v428
      %vm435 = vweird.f32 %v429
      %vm436 = vmor %vm434, %vm435
      %v437 = vsel %vm436, %v429, %v433
      %v438 = vand.u32 2147483647, %v428
      %vm439 = vcmp.eq.f32.partialorder %v438, 8.507059e+37
      %v440 = vand.u32 %v428, 2147483648
      %v441 = vor.u32 1.1754944e-38, %v440
      %v442 = vsel %vm439, %v441, %v437
      %v443 = vmul.f32 1.0, %v442
      %v444 = vtanh.pop %v424
      %v445 = vmul.f32 %v443, %v386
      %447 = vrot.lane.b32.xlu0 %v444, 64
      %v448 = vpop.permute.xlu0 %447
      %v450 = vmul.f32 %v443, %v448
      %452 = vrot.lane.b32.xlu0 %v450, 32
      %v453 = vpop.permute.xlu0 %452
      %v455 = vadd.f32 %v445, %v453
      %v456 = vtanh.pop %v455
      %458 = vrot.lane.b32.xlu0 %v456, 64
      %v459 = vpop.permute.xlu0 %458
      %v461 = vmul.f32 %v443, %v459
      %463 = vrot.lane.b32.xlu0 %v461, 32
      %v464 = vpop.permute.xlu0 %463
      %s466 = scalar_lea.vmem [#allocation3], %s399
      %467 = vst.msk [vmem:[%s466] sm:$0x1] %vm190, %v464
      %s468 = sadd.s32 %s116, 5
      %s469 = scalar_lea.vmem [#allocation2], %s468
      %v470 = vld [vmem:[%s469] sm:$0x1]
      %v471 = vsel %vm119, %v464, 0
      %473 = vmatpush.msra.mxu0 0.0
      %474 = vmatpush.msra.mxu0 0.0
      %475 = vmatpush.msra.mxu0 0.0
      %476 = vmatpush.msra.mxu0 0.0
      %477 = vmatpush.msra.mxu0 0.0
      %478 = vmatpush.msra.mxu0 0.0
      %479 = vmatpush.msra.mxu0 0.0
      %480 = vmatpush.msra.mxu0 0.0
      %481 = vmatpush.msra.mxu0 0.0
      %482 = vmatpush.msra.mxu0 0.0
      %483 = vmatpush.msra.mxu0 0.0
      %484 = vmatpush.msra.mxu0 0.0
      %485 = vmatpush.msra.mxu0 %v105
      %486 = vmatpush.msra.mxu0 %v104
      %487 = vmatpush.msra.mxu0 %v103
      %488 = vmatpush.msra.mxu0 %v102
      %489 = vmatmul.f32.gmra.mxu0 %v471
      %v490 = vpop.f32.mrf.mxu0
      %v491 = vadd.f32 0.0, %v490
      %492 = vdwg.mxu0
      %v493 = vadd.f32 %v470, %v491
      %v494 = vxor.u32 %v493, 2147483648
      %v495 = vmul.f32 %v494, 1.442695
      %v496 = vpow.pop %v495
      %v497 = vadd.f32 %v496, 1.0
      %v498 = vrcp.pop %v497
      %v499 = vmul.f32 %v497, %v498
      %v500 = vsub.f32 1.0, %v499
      %v501 = vmul.f32 %v498, %v500
      %v502 = vadd.f32 %v498, %v501
      %vm503 = vweird.f32 %v497
      %vm504 = vweird.f32 %v498
      %vm505 = vmor %vm503, %vm504
      %v506 = vsel %vm505, %v498, %v502
      %v507 = vand.u32 2147483647, %v497
      %vm508 = vcmp.eq.f32.partialorder %v507, 8.507059e+37
      %v509 = vand.u32 %v497, 2147483648
      %v510 = vor.u32 1.1754944e-38, %v509
      %v511 = vsel %vm508, %v510, %v506
      %v512 = vmul.f32 1.0, %v511
      %v513 = vtanh.pop %v493
      %v514 = vmul.f32 %v512, %v455
      %516 = vrot.lane.b32.xlu0 %v513, 64
      %v517 = vpop.permute.xlu0 %516
      %v519 = vmul.f32 %v512, %v517
      %521 = vrot.lane.b32.xlu0 %v519, 32
      %v522 = vpop.permute.xlu0 %521
      %v524 = vadd.f32 %v514, %v522
      %v525 = vtanh.pop %v524
      %527 = vrot.lane.b32.xlu0 %v525, 64
      %v528 = vpop.permute.xlu0 %527
      %v530 = vmul.f32 %v512, %v528
      %532 = vrot.lane.b32.xlu0 %v530, 32
      %v533 = vpop.permute.xlu0 %532
      %s535 = scalar_lea.vmem [#allocation3], %s468
      %536 = vst.msk [vmem:[%s535] sm:$0x1] %vm190, %v533
      %s537 = sadd.s32 %s116, 6
      %s538 = scalar_lea.vmem [#allocation2], %s537
      %v539 = vld [vmem:[%s538] sm:$0x1]
      %v540 = vsel %vm119, %v533, 0
      %542 = vmatpush.msra.mxu0 0.0
      %543 = vmatpush.msra.mxu0 0.0
      %544 = vmatpush.msra.mxu0 0.0
      %545 = vmatpush.msra.mxu0 0.0
      %546 = vmatpush.msra.mxu0 0.0
      %547 = vmatpush.msra.mxu0 0.0
      %548 = vmatpush.msra.mxu0 0.0
      %549 = vmatpush.msra.mxu0 0.0
      %550 = vmatpush.msra.mxu0 0.0
      %551 = vmatpush.msra.mxu0 0.0
      %552 = vmatpush.msra.mxu0 0.0
      %553 = vmatpush.msra.mxu0 0.0
      %554 = vmatpush.msra.mxu0 %v105
      %555 = vmatpush.msra.mxu0 %v104
      %556 = vmatpush.msra.mxu0 %v103
      %557 = vmatpush.msra.mxu0 %v102
      %558 = vmatmul.f32.gmra.mxu0 %v540
      %v559 = vpop.f32.mrf.mxu0
      %v560 = vadd.f32 0.0, %v559
      %561 = vdwg.mxu0
      %v562 = vadd.f32 %v539, %v560
      %v563 = vxor.u32 %v562, 2147483648
      %v564 = vmul.f32 %v563, 1.442695
      %v565 = vpow.pop %v564
      %v566 = vadd.f32 %v565, 1.0
      %v567 = vrcp.pop %v566
      %v568 = vmul.f32 %v566, %v567
      %v569 = vsub.f32 1.0, %v568
      %v570 = vmul.f32 %v567, %v569
      %v571 = vadd.f32 %v567, %v570
      %vm572 = vweird.f32 %v566
      %vm573 = vweird.f32 %v567
      %vm574 = vmor %vm572, %vm573
      %v575 = vsel %vm574, %v567, %v571
      %v576 = vand.u32 2147483647, %v566
      %vm577 = vcmp.eq.f32.partialorder %v576, 8.507059e+37
      %v578 = vand.u32 %v566, 2147483648
      %v579 = vor.u32 1.1754944e-38, %v578
      %v580 = vsel %vm577, %v579, %v575
      %v581 = vmul.f32 1.0, %v580
      %v582 = vtanh.pop %v562
      %v583 = vmul.f32 %v581, %v524
      %585 = vrot.lane.b32.xlu0 %v582, 64
      %v586 = vpop.permute.xlu0 %585
      %v588 = vmul.f32 %v581, %v586
      %590 = vrot.lane.b32.xlu0 %v588, 32
      %v591 = vpop.permute.xlu0 %590
      %v593 = vadd.f32 %v583, %v591
      %v594 = vtanh.pop %v593
      %596 = vrot.lane.b32.xlu0 %v594, 64
      %v597 = vpop.permute.xlu0 %596
      %v599 = vmul.f32 %v581, %v597
      %601 = vrot.lane.b32.xlu0 %v599, 32
      %v602 = vpop.permute.xlu0 %601
      %s604 = scalar_lea.vmem [#allocation3], %s537
      %605 = vst.msk [vmem:[%s604] sm:$0x1] %vm190, %v602
      %s606 = sadd.s32 %s116, 7
      %s607 = scalar_lea.vmem [#allocation2], %s606
      %v608 = vld [vmem:[%s607] sm:$0x1]
      %v609 = vsel %vm119, %v602, 0
      %611 = vmatpush.msra.mxu0 0.0
      %612 = vmatpush.msra.mxu0 0.0
      %613 = vmatpush.msra.mxu0 0.0
      %614 = vmatpush.msra.mxu0 0.0
      %615 = vmatpush.msra.mxu0 0.0
      %616 = vmatpush.msra.mxu0 0.0
      %617 = vmatpush.msra.mxu0 0.0
      %618 = vmatpush.msra.mxu0 0.0
      %619 = vmatpush.msra.mxu0 0.0
      %620 = vmatpush.msra.mxu0 0.0
      %621 = vmatpush.msra.mxu0 0.0
      %622 = vmatpush.msra.mxu0 0.0
      %623 = vmatpush.msra.mxu0 %v105
      %624 = vmatpush.msra.mxu0 %v104
      %625 = vmatpush.msra.mxu0 %v103
      %626 = vmatpush.msra.mxu0 %v102
      %627 = vmatmul.f32.gmra.mxu0 %v609
      %v628 = vpop.f32.mrf.mxu0
      %v629 = vadd.f32 0.0, %v628
      %630 = vdwg.mxu0
      %v631 = vadd.f32 %v608, %v629
      %v632 = vxor.u32 %v631, 2147483648
      %v633 = vmul.f32 %v632, 1.442695
      %v634 = vpow.pop %v633
      %v635 = vadd.f32 %v634, 1.0
      %v636 = vrcp.pop %v635
      %v637 = vmul.f32 %v635, %v636
      %v638 = vsub.f32 1.0, %v637
      %v639 = vmul.f32 %v636, %v638
      %v640 = vadd.f32 %v636, %v639
      %vm641 = vweird.f32 %v635
      %vm642 = vweird.f32 %v636
      %vm643 = vmor %vm641, %vm642
      %v644 = vsel %vm643, %v636, %v640
      %v645 = vand.u32 2147483647, %v635
      %vm646 = vcmp.eq.f32.partialorder %v645, 8.507059e+37
      %v647 = vand.u32 %v635, 2147483648
      %v648 = vor.u32 1.1754944e-38, %v647
      %v649 = vsel %vm646, %v648, %v644
      %v650 = vmul.f32 1.0, %v649
      %v651 = vtanh.pop %v631
      %v652 = vmul.f32 %v650, %v593
      %654 = vrot.lane.b32.xlu0 %v651, 64
      %v655 = vpop.permute.xlu0 %654
      %v657 = vmul.f32 %v650, %v655
      %659 = vrot.lane.b32.xlu0 %v657, 32
      %v660 = vpop.permute.xlu0 %659
      %v662 = vadd.f32 %v652, %v660
      %v663 = vtanh.pop %v662
      %665 = vrot.lane.b32.xlu0 %v663, 64
      %v666 = vpop.permute.xlu0 %665
      %v668 = vmul.f32 %v650, %v666
      %670 = vrot.lane.b32.xlu0 %v668, 32
      %v671 = vpop.permute.xlu0 %670
      %s673 = scalar_lea.vmem [#allocation3], %s606
      %674 = vst.msk [vmem:[%s673] sm:$0x1] %vm190, %v671
      %676 = vrot.lane.b32.xlu0 %v662, 96
      %v677 = vpop.permute.xlu0 %676
    $region50: #{tpu_custom_call.1} parent=1 // loop_footer
      %s113 = sadd.s32 1, %s109
    $region51: #{tpu_custom_call.1} parent=1 // loop_footer_branch
      %108 = sbr.rel target = $region47
    $region52: #{tpu_custom_call.1} parent=1 // loop_exit
      _
    %vm679 = vcmask 253952
    %680 = vst.msk [vmem:[#allocation4] sm:$0x1] %vm679, %v114
    %681 = vst.msk [vmem:[#allocation5] sm:$0x1] %vm679, %v115
    %v682 = vld [vmem:[#allocation3] sm:$0xff]
    %v683 = vld [vmem:[#allocation3 + $0x8] sm:$0xff]
    %v684 = vpack.c.bf16 %v683, %v682
    %v685 = vld [vmem:[%s4] sm:$0xf]
    %v686 = vld [vmem:[%s4 + $0x4] sm:$0xf]
    %v687 = vld [vmem:[%s4 + $0x8] sm:$0xf]
    %v688 = vld [vmem:[%s4 + $0xc] sm:$0xf]
    %v689 = vld [vmem:[%s5] sm:$0x1]
    %v691 = vperm.slane %v689, 0
    %v697 = vunpack.c.l.b16 %v685
    %v698 = vunpack.c.l.b16 %v686
    %v699 = vunpack.c.l.b16 %v687
    %v700 = vunpack.c.l.b16 %v688
    %v701 = vpack.c.b16 %v698, %v697
    %v702 = vpack.c.b16 %v700, %v699
    %vm705 = vcmask 261120
    %v707 = vsel %vm705, %v684, 0
    %709 = vmatpush.bf16.msra.mxu0 0
    %710 = vmatpush.bf16.msra.mxu0 0
    %711 = vmatpush.bf16.msra.mxu0 0
    %712 = vmatpush.bf16.msra.mxu0 0
    %713 = vmatpush.bf16.msra.mxu0 0
    %714 = vmatpush.bf16.msra.mxu0 0
    %715 = vmatpush.bf16.msra.mxu0 %v702
    %716 = vmatpush.bf16.msra.mxu0 %v701
    %717 = vmatmul.bf16.gmra.mxu0 %v707
    %v718 = vpop.f32.mrf.mxu0
    %v719 = vadd.f32 %v691, %v718
    %v720 = vpop.f32.mrf.mxu0
    %v721 = vadd.f32 %v691, %v720
    %722 = vdwg.mxu0
    %v723 = vmax.f32 %v719, 0.0
    %v724 = vmax.f32 %v721, 0.0
    %v725 = vpack.c.bf16 %v724, %v723
    %v726 = vld [vmem:[#allocation9] sm:$0xf]
    %v727 = vld [vmem:[#allocation9 + $0x4] sm:$0xf]
    %v728 = vld [vmem:[#allocation9 + $0x8] sm:$0xf]
    %v729 = vld [vmem:[#allocation9 + $0xc] sm:$0xf]
    %v730 = vld [vmem:[%s7] sm:$0x1]
    %v732 = vperm.slane %v730, 0
    %v738 = vunpack.c.l.b16 %v726
    %v739 = vunpack.c.l.b16 %v727
    %v740 = vunpack.c.l.b16 %v728
    %v741 = vunpack.c.l.b16 %v729
    %v742 = vpack.c.b16 %v739, %v738
    %v743 = vpack.c.b16 %v741, %v740
    %v747 = vsel %vm705, %v725, 0
    %749 = vmatpush.bf16.msra.mxu0 0
    %750 = vmatpush.bf16.msra.mxu0 0
    %751 = vmatpush.bf16.msra.mxu0 0
    %752 = vmatpush.bf16.msra.mxu0 0
    %753 = vmatpush.bf16.msra.mxu0 0
    %754 = vmatpush.bf16.msra.mxu0 0
    %755 = vmatpush.bf16.msra.mxu0 %v743
    %756 = vmatpush.bf16.msra.mxu0 %v742
    %757 = vmatmul.bf16.gmra.mxu0 %v747
    %v758 = vpop.f32.mrf.mxu0
    %v759 = vadd.f32 %v732, %v758
    %v760 = vpop.f32.mrf.mxu0
    %v761 = vadd.f32 %v732, %v760
    %762 = vdwg.mxu0
    %763 = vst [vmem:[#allocation11] sm:$0xff] %v759
    %764 = vst [vmem:[#allocation11 + $0x8] sm:$0xff] %v761
    // Predicated region
    $region53: #{tpu_custom_call.1} parent=1 // pred_check
      _
    $region54: #{tpu_custom_call.1} parent=1 // pred_check_branch
      %766 = sbr.rel (0) target = $region56
    $region55: #{tpu_custom_call.1} parent=1 // pred_region
      %768 = vsyncadd [#allocation8], 0
      %s769 = sshll.u32 [#allocation11], 4
      %s770 = int_to_ptr.vmem [resolvable:$true] %s769
      %s771 = sshll.u32 %s8, 4
      %s772 = int_to_ptr.hbm [resolvable:$true] %s771
      %777 = dma.vmem_to_hbm [thread:$0]  %s770, 256, %s772, [#allocation8], 128, 128, 8
    $region56: #{tpu_custom_call.1} parent=1 // pred_fallthru
      _
    // Predicated region
    $region57: #{tpu_custom_call.1} parent=1 // pred_check
      _
    $region58: #{tpu_custom_call.1} parent=1 // pred_check_branch
      %779 = sbr.rel (0) target = $region60
    $region59: #{tpu_custom_call.1} parent=1 // pred_region
      %781 = dma.done [#allocation8], 256
    $region60: #{tpu_custom_call.1} parent=1 // pred_fallthru
      _
    %782 = vsyncpa [#allocation7], 1
    %783 = vsyncpa [#allocation10], 1
    %784 = vsyncpa [#allocation8], 1

</llo_original>
